<compile_context>
chip_gen: v7x
topology: tpu7x:2x2x1
jax: 0.10.0
libtpu: 0.0.40
codegen_flags: <defaults>
</compile_context>

<pallas_src>
import jax
import jax.numpy as jnp
from jax.experimental import pallas as pl
from jax.experimental.pallas import tpu as pltpu

# Packed parameter-slab row layout (all rows 128 f32 lanes wide, lane 0-based).
_R_W1 = 0        # rows   0..63 : W1^T in lanes 0..3, b1 in lane 4
_R_W2 = 64       # rows  64..95 : W2^T in lanes 0..63
_R_B2 = 96       # rows  96..127: b2 in lane 0
_R_W3 = 128      # rows 128..159: w3 in lane 0
_R_B3 = 160      # row  160     : b3 in lane 0
_SLAB_ROWS = 168  # padded to a multiple of 8 sublanes


def mlp_kernel(x_ref, w_ref, o_ref):
    xt = x_ref[...]                                   # (8, TILE_B): rows 0..3 = features^T, rows 4..7 = 0

    # ---- Layer 1 (4 -> 64) + ReLU on the VPU: bias column + 4 broadcast FMAs.
    w1blk = w_ref[_R_W1:_R_W1 + 64, 0:8]              # (64, 8): cols 0..3 = W1^T, col 4 = b1
    h1 = w1blk[:, 4:5]                                # (64, 1) bias column
    for k in range(4):                                # unrolled at trace time
        h1 = h1 + w1blk[:, k:k + 1] * xt[k:k + 1, :]  # (64,1)*(1,TILE_B) -> (64, TILE_B)
    h1 = jnp.maximum(h1, 0.0)                         # (64, TILE_B)

    # ---- Layer 2 (64 -> 32) + ReLU on the MXU.
    w2t = w_ref[_R_W2:_R_W2 + 32, 0:64]               # (32, 64) = W2^T
    b2c = w_ref[_R_B2:_R_B2 + 32, 0:1]                # (32, 1)
    h2 = jnp.maximum(
        jnp.dot(w2t, h1, preferred_element_type=jnp.float32) + b2c, 0.0)  # (32, TILE_B)

    # ---- Layer 3 (32 -> 1): VPU multiply + XLU sublane reduction, lane-dense output row.
    w3c = w_ref[_R_W3:_R_W3 + 32, 0:1]                # (32, 1)
    b3 = w_ref[_R_B3:_R_B3 + 1, 0:1]                  # (1, 1)
    o_ref[...] = jnp.sum(h2 * w3c, axis=0, keepdims=True) + b3  # (1, TILE_B)


def pack_params(w1, b1, w2, b2, w3, b3):
    """Pack all layer parameters into one lane-aligned (168, 128) f32 slab."""
    slab = jnp.zeros((_SLAB_ROWS, 128), jnp.float32)
    slab = slab.at[_R_W1:_R_W1 + 64, 0:4].set(w1.T)            # (64, 4)  = W1^T
    slab = slab.at[_R_W1:_R_W1 + 64, 4].set(b1.reshape(64))
    slab = slab.at[_R_W2:_R_W2 + 32, 0:64].set(w2.T)           # (32, 64) = W2^T
    slab = slab.at[_R_B2:_R_B2 + 32, 0].set(b2.reshape(32))
    slab = slab.at[_R_W3:_R_W3 + 32, 0].set(w3.reshape(32))
    slab = slab.at[_R_B3, 0].set(jnp.squeeze(b3))
    return slab


def _pallas_forward(x, param_slab, *, tile_b_max=2048):
    B, F = x.shape
    # Pad the batch to a lane multiple and tile it; sweepable up to tile_b_max.
    b128 = max(128, ((B + 127) // 128) * 128)
    tile_b = min(b128, tile_b_max)
    b_pad = ((b128 + tile_b - 1) // tile_b) * tile_b

    # Narrow transposed input slab: (8, B_pad), features along sublanes, batch along lanes.
    xt = jnp.zeros((8, b_pad), jnp.float32).at[:F, :B].set(x.T)

    out = pl.pallas_call(
        mlp_kernel,
        out_shape=jax.ShapeDtypeStruct((1, b_pad), jnp.float32),
        grid=(b_pad // tile_b,),
        in_specs=[
            pl.BlockSpec((8, tile_b), lambda i: (0, i)),          # batch tile of x^T
            pl.BlockSpec((_SLAB_ROWS, 128), lambda i: (0, 0)),    # params, resident
        ],
        out_specs=pl.BlockSpec((1, tile_b), lambda i: (0, i)),    # lane-dense output row
        compiler_params=pltpu.CompilerParams(
            dimension_semantics=("parallel",)),
    )(xt, param_slab)

    return out[0, :B].reshape(B, 1)


def _xla_forward(x, param_slab):
    """Fused pure-XLA path for small batches (kernel launch not worth it)."""
    w1 = param_slab[_R_W1:_R_W1 + 64, 0:4].T
    b1 = param_slab[_R_W1:_R_W1 + 64, 4]
    w2 = param_slab[_R_W2:_R_W2 + 32, 0:64].T
    b2 = param_slab[_R_B2:_R_B2 + 32, 0]
    w3 = param_slab[_R_W3:_R_W3 + 32, 0:1]
    b3 = param_slab[_R_B3, 0]
    h = jnp.maximum(x @ w1 + b1[None, :], 0.0)
    h = jnp.maximum(h @ w2 + b2[None, :], 0.0)
    return h @ w3 + b3


def dotacion_personal_nn(x, param_slab, *, force_pallas=False, small_batch_threshold=512):
    """Forward pass. x: (B, 4) f32. Returns (B, 1) f32."""
    if (not force_pallas) and x.shape[0] < small_batch_threshold:
        return _xla_forward(x, param_slab)
    return _pallas_forward(x, param_slab)


def init_params(key):
    # Deterministic init mimicking torch.nn.Linear default (uniform +/- 1/sqrt(fan_in)).
    def linear(k, fan_in, fan_out):
        k_w, k_b = jax.random.split(k)
        bound = 1.0 / (fan_in ** 0.5)
        w = jax.random.uniform(k_w, (fan_in, fan_out), jnp.float32, -bound, bound)
        b = jax.random.uniform(k_b, (fan_out,), jnp.float32, -bound, bound)
        return w, b

    k1, k2, k3 = jax.random.split(key, 3)
    w1, b1 = linear(k1, 4, 64)
    w2, b2 = linear(k2, 64, 32)
    w3, b3 = linear(k3, 32, 1)
    return w1, b1, w2, b2, w3, b3


if __name__ == "__main__":
    key = jax.random.PRNGKey(0)
    k_x, k_p = jax.random.split(key)

    batch = 8
    x = jax.random.normal(k_x, (batch, 4), dtype=jnp.float32)
    w1, b1, w2, b2, w3, b3 = init_params(k_p)
    param_slab = pack_params(w1, b1, w2, b2, w3, b3)

    # Force the Pallas path so the kernel itself is exercised at this small batch.
    out = dotacion_personal_nn(x, param_slab, force_pallas=True)
    out = jax.block_until_ready(out)

    # Pure-JAX reference check of the forward semantics (unpacked weights).
    h = jnp.maximum(x @ w1 + b1[None, :], 0.0)
    h = jnp.maximum(h @ w2 + b2[None, :], 0.0)
    ref = h @ w3 + b3[None, :]
    assert out.shape == (batch, 1)
    assert jnp.allclose(out, ref, atol=1e-5, rtol=1e-5), "mismatch vs reference"

    print("KERNEL_OK")
</pallas_src>

<mosaic_0001>
module attributes {stable_mosaic.version = 11 : i64} {
  func.func @mlp_kernel(%arg0: i32, %arg1: memref<8x128xf32, #tpu.memory_space<vmem>>, %arg2: memref<168x128xf32, #tpu.memory_space<vmem>>, %arg3: memref<1x128xf32, #tpu.memory_space<vmem>>) attributes {dimension_semantics = [#tpu.dimension_semantics<parallel>], iteration_bounds = array<i64: 1>, scalar_prefetch = 0 : i64, scratch_operands = 0 : i64, tpu.core_type = #tpu.core_type<tc>, window_params = [{transform_indices = @transform_0, window_bounds = array<i64: 8, 128>}, {pipeline_mode = #tpu.pipeline_mode<synchronous>, transform_indices = @transform_1, window_bounds = array<i64: 168, 128>}, {transform_indices = @transform_2, window_bounds = array<i64: 1, 128>}]} {
    %c0 = arith.constant 0 : index
    %c0_0 = arith.constant 0 : index
    %0 = vector.load %arg1[%c0, %c0_0] : memref<8x128xf32, #tpu.memory_space<vmem>>, vector<8x128xf32>
    %c0_1 = arith.constant 0 : index
    %c0_2 = arith.constant 0 : index
    %1 = vector.load %arg2[%c0_1, %c0_2] : memref<168x128xf32, #tpu.memory_space<vmem>>, vector<64x8xf32>
    %2 = vector.extract_strided_slice %1 {offsets = [0, 4], sizes = [64, 1], strides = [1, 1]} : vector<64x8xf32> to vector<64x1xf32>
    %3 = vector.extract_strided_slice %1 {offsets = [0, 0], sizes = [64, 1], strides = [1, 1]} : vector<64x8xf32> to vector<64x1xf32>
    %4 = vector.extract_strided_slice %0 {offsets = [0, 0], sizes = [1, 128], strides = [1, 1]} : vector<8x128xf32> to vector<1x128xf32>
    %5 = vector.broadcast %3 : vector<64x1xf32> to vector<64x128xf32>
    %6 = vector.broadcast %4 : vector<1x128xf32> to vector<64x128xf32>
    %7 = arith.mulf %5, %6 : vector<64x128xf32>
    %8 = vector.broadcast %2 : vector<64x1xf32> to vector<64x128xf32>
    %9 = arith.addf %8, %7 : vector<64x128xf32>
    %10 = vector.extract_strided_slice %1 {offsets = [0, 1], sizes = [64, 1], strides = [1, 1]} : vector<64x8xf32> to vector<64x1xf32>
    %11 = vector.extract_strided_slice %0 {offsets = [1, 0], sizes = [1, 128], strides = [1, 1]} : vector<8x128xf32> to vector<1x128xf32>
    %12 = vector.broadcast %10 : vector<64x1xf32> to vector<64x128xf32>
    %13 = vector.broadcast %11 : vector<1x128xf32> to vector<64x128xf32>
    %14 = arith.mulf %12, %13 : vector<64x128xf32>
    %15 = arith.addf %9, %14 : vector<64x128xf32>
    %16 = vector.extract_strided_slice %1 {offsets = [0, 2], sizes = [64, 1], strides = [1, 1]} : vector<64x8xf32> to vector<64x1xf32>
    %17 = vector.extract_strided_slice %0 {offsets = [2, 0], sizes = [1, 128], strides = [1, 1]} : vector<8x128xf32> to vector<1x128xf32>
    %18 = vector.broadcast %16 : vector<64x1xf32> to vector<64x128xf32>
    %19 = vector.broadcast %17 : vector<1x128xf32> to vector<64x128xf32>
    %20 = arith.mulf %18, %19 : vector<64x128xf32>
    %21 = arith.addf %15, %20 : vector<64x128xf32>
    %22 = vector.extract_strided_slice %1 {offsets = [0, 3], sizes = [64, 1], strides = [1, 1]} : vector<64x8xf32> to vector<64x1xf32>
    %23 = vector.extract_strided_slice %0 {offsets = [3, 0], sizes = [1, 128], strides = [1, 1]} : vector<8x128xf32> to vector<1x128xf32>
    %24 = vector.broadcast %22 : vector<64x1xf32> to vector<64x128xf32>
    %25 = vector.broadcast %23 : vector<1x128xf32> to vector<64x128xf32>
    %26 = arith.mulf %24, %25 : vector<64x128xf32>
    %27 = arith.addf %21, %26 : vector<64x128xf32>
    %cst = arith.constant 0.000000e+00 : f32
    %28 = vector.broadcast %cst : f32 to vector<64x128xf32>
    %29 = arith.maximumf %27, %28 : vector<64x128xf32>
    %c64 = arith.constant 64 : index
    %c0_3 = arith.constant 0 : index
    %30 = vector.load %arg2[%c64, %c0_3] : memref<168x128xf32, #tpu.memory_space<vmem>>, vector<32x64xf32>
    %c96 = arith.constant 96 : index
    %c0_4 = arith.constant 0 : index
    %31 = vector.load %arg2[%c96, %c0_4] : memref<168x128xf32, #tpu.memory_space<vmem>>, vector<32x1xf32>
    %cst_5 = arith.constant dense<0.000000e+00> : vector<32x128xf32>
    %32 = tpu.matmul %30, %29, %cst_5 {dimension_numbers = #tpu.dot_dimension_numbers<[1], [0], [0], [1], [0, 0, 1, 1], [], []>} : vector<32x64xf32>, vector<64x128xf32>, vector<32x128xf32> -> vector<32x128xf32>
    %33 = vector.broadcast %31 : vector<32x1xf32> to vector<32x128xf32>
    %34 = arith.addf %32, %33 : vector<32x128xf32>
    %cst_6 = arith.constant 0.000000e+00 : f32
    %35 = vector.broadcast %cst_6 : f32 to vector<32x128xf32>
    %36 = arith.maximumf %34, %35 : vector<32x128xf32>
    %c128 = arith.constant 128 : index
    %c0_7 = arith.constant 0 : index
    %37 = vector.load %arg2[%c128, %c0_7] : memref<168x128xf32, #tpu.memory_space<vmem>>, vector<32x1xf32>
    %c160 = arith.constant 160 : index
    %c0_8 = arith.constant 0 : index
    %38 = vector.load %arg2[%c160, %c0_8] : memref<168x128xf32, #tpu.memory_space<vmem>>, vector<1x1xf32>
    %39 = vector.broadcast %37 : vector<32x1xf32> to vector<32x128xf32>
    %40 = arith.mulf %36, %39 : vector<32x128xf32>
    %cst_9 = arith.constant dense<0.000000e+00> : vector<128xf32>
    %41 = vector.multi_reduction <add>, %40, %cst_9 [0] : vector<32x128xf32> to vector<128xf32>
    %42 = vector.shape_cast %41 : vector<128xf32> to vector<1x128xf32>
    %43 = vector.broadcast %38 : vector<1x1xf32> to vector<1x128xf32>
    %44 = arith.addf %42, %43 : vector<1x128xf32>
    %c0_10 = arith.constant 0 : index
    %c0_11 = arith.constant 0 : index
    %45 = vector.load %arg3[%c0_10, %c0_11] : memref<1x128xf32, #tpu.memory_space<vmem>>, vector<1x128xf32>
    tpu.vector_store %arg3[%c0_10, %c0_11], %44 {strides = array<i32>} : memref<1x128xf32, #tpu.memory_space<vmem>>, vector<1x128xf32>,
    return
  }
  func.func @transform_0(%arg0: i32) -> (i32, i32) {
    %c0_i32 = arith.constant 0 : i32
    %c0_i32_0 = arith.constant 0 : i32
    return %c0_i32, %arg0 : i32, i32
  }
  func.func @transform_1(%arg0: i32) -> (i32, i32) {
    %c0_i32 = arith.constant 0 : i32
    %c0_i32_0 = arith.constant 0 : i32
    %c0_i32_1 = arith.constant 0 : i32
    return %c0_i32, %c0_i32_0 : i32, i32
  }
  func.func @transform_2(%arg0: i32) -> (i32, i32) {
    %c0_i32 = arith.constant 0 : i32
    %c0_i32_0 = arith.constant 0 : i32
    return %c0_i32, %arg0 : i32, i32
  }
}

</mosaic_0001>

<llo_original>
// kernel: tpu_custom_call.1
$region0: #{tpu_custom_call.1}
  #allocation0 [shape = 'u32[]', space=smem, size = 0x4, offset = 0x4, fixed_abs, tag = 'smem constant byte address 0x4 - core index']
  #allocation1 [shape = 'u32[144,128]{1,0:T(1,128)}', space=vmem, size = 0x12000, scoped, tag = 'internal scratch']
  %s0 = inlined_call_operand.hbm [shape: f32[8,128], index: 0, kind: input, shape index: {}]
  %s1 = inlined_call_operand.hbm [shape: f32[168,128], index: 1, kind: input, shape index: {}]
  %s2 = inlined_call_operand.hbm [shape: f32[1,128], index: 2, kind: output, shape index: {}]
  %s3 = sld [smem:[#allocation0]]
  $region26: #{tpu_custom_call.1} parent=0
    _
  %s5 = ssub.s32 1, %s3
  %s6 = scalar_select 0, %s5, %s3
  $region1: #{tpu_custom_call.1} parent=0
    #allocation2 [shape = 'u8[4096]{0}', space=vmem, size = 0x1000, scoped, tag = 'input window, operand 0, single buffered']
    #allocation3 [shape = 's32[1]{0}', space=sflag, size = 0x4, scoped, tag = 'scoped memory for tpu_custom_call.1']
    #allocation4 [shape = 's32[1]{0}', space=sflag, size = 0x4, scoped, tag = 'scoped memory for tpu_custom_call.1']
    #allocation5 [shape = 'u8[86016]{0}', space=vmem, size = 0x15000, scoped, tag = 'input window, operand 1, single buffered']
    #allocation6 [shape = 's32[1]{0}', space=sflag, size = 0x4, scoped, tag = 'scoped memory for tpu_custom_call.1']
    #allocation7 [shape = 'u8[512]{0}', space=vmem, size = 0x400, scoped, tag = 'output window, operand 0, single buffered']
    %7 = vsyncpa [#allocation3], 0
    %8 = vsyncpa [#allocation6], 0
    %9 = vsyncpa [#allocation4], 0
    // Predicated region
    $region2: #{tpu_custom_call.1} parent=1 // pred_check
      _
    $region3: #{tpu_custom_call.1} parent=1 // pred_check_branch
      %11 = sbr.rel (0) target = $region5
    $region4: #{tpu_custom_call.1} parent=1 // pred_region
      %s13 = ssub.s32 128, 128
      %14 = vsyncadd [#allocation3], %s13
      %s16 = sshll.u32 [#allocation2], 4
      %s17 = int_to_ptr.vmem [resolvable:$true] %s16
      %19 = dma.hbm_to_vmem [thread:$0]  %s0, 128, %s17, [#allocation3]
    $region5: #{tpu_custom_call.1} parent=1 // pred_fallthru
      _
    // Predicated region
    $region6: #{tpu_custom_call.1} parent=1 // pred_check
      _
    $region7: #{tpu_custom_call.1} parent=1 // pred_check_branch
      %21 = sbr.rel (0) target = $region9
    $region8: #{tpu_custom_call.1} parent=1 // pred_region
      %s23 = ssub.s32 2688, 2688
      %24 = vsyncadd [#allocation6], %s23
      %s25 = sshll.u32 [#allocation5], 4
      %s26 = int_to_ptr.vmem [resolvable:$true] %s25
      %31 = dma.hbm_to_vmem [thread:$0]  %s1, 2688, %s26, [#allocation6], 128, 128, 8
    $region9: #{tpu_custom_call.1} parent=1 // pred_fallthru
      _
    // Predicated region
    $region10: #{tpu_custom_call.1} parent=1 // pred_check
      _
    $region11: #{tpu_custom_call.1} parent=1 // pred_check_branch
      %33 = sbr.rel (0) target = $region13
    $region12: #{tpu_custom_call.1} parent=1 // pred_region
      %34 = dma.done [#allocation3], 128
    $region13: #{tpu_custom_call.1} parent=1 // pred_fallthru
      _
    // Predicated region
    $region14: #{tpu_custom_call.1} parent=1 // pred_check
      _
    $region15: #{tpu_custom_call.1} parent=1 // pred_check_branch
      %36 = sbr.rel (0) target = $region17
    $region16: #{tpu_custom_call.1} parent=1 // pred_region
      %37 = dma.done [#allocation6], 2688
    $region17: #{tpu_custom_call.1} parent=1 // pred_fallthru
      _
    %v38 = vld [vmem:[#allocation2] sm:$0xff]
    %v39 = vld [vmem:[#allocation5] sm:$0xff]
    %v40 = vld [vmem:[#allocation5 + $0x8] sm:$0xff]
    %v41 = vld [vmem:[#allocation5 + $0x10] sm:$0xff]
    %v42 = vld [vmem:[#allocation5 + $0x18] sm:$0xff]
    %v43 = vld [vmem:[#allocation5 + $0x20] sm:$0xff]
    %v44 = vld [vmem:[#allocation5 + $0x28] sm:$0xff]
    %v45 = vld [vmem:[#allocation5 + $0x30] sm:$0xff]
    %v46 = vld [vmem:[#allocation5 + $0x38] sm:$0xff]
    %48 = vset.pattern.permute.xlu0 0
    %49 = vperm.xlu0 %48, %v39
    %v50 = vpop.permute.xlu0 %49
    %53 = vset.pattern.permute.xlu0 0
    %54 = vperm.xlu0 %53, %v40
    %v55 = vpop.permute.xlu0 %54
    %58 = vset.pattern.permute.xlu0 0
    %59 = vperm.xlu0 %58, %v41
    %v60 = vpop.permute.xlu0 %59
    %63 = vset.pattern.permute.xlu0 0
    %64 = vperm.xlu0 %63, %v42
    %v65 = vpop.permute.xlu0 %64
    %68 = vset.pattern.permute.xlu0 0
    %69 = vperm.xlu0 %68, %v43
    %v70 = vpop.permute.xlu0 %69
    %73 = vset.pattern.permute.xlu0 0
    %74 = vperm.xlu0 %73, %v44
    %v75 = vpop.permute.xlu0 %74
    %78 = vset.pattern.permute.xlu0 0
    %79 = vperm.xlu0 %78, %v45
    %v80 = vpop.permute.xlu0 %79
    %83 = vset.pattern.permute.xlu0 0
    %84 = vperm.xlu0 %83, %v46
    %v85 = vpop.permute.xlu0 %84
    %v87 = vlaneseq
    %v88 = vshrl.u32 %v87, 7
    %v89 = vsub.s32 0, %v88
    %v90 = vrot.slane %v38, %v89
    %v91 = vmul.f32 %v50, %v90
    %v92 = vmul.f32 %v55, %v90
    %v93 = vmul.f32 %v60, %v90
    %v94 = vmul.f32 %v65, %v90
    %v95 = vmul.f32 %v70, %v90
    %v96 = vmul.f32 %v75, %v90
    %v97 = vmul.f32 %v80, %v90
    %v98 = vmul.f32 %v85, %v90
    %99 = vset.pattern.permute.xlu0 4
    %100 = vperm.xlu0 %99, %v39
    %v101 = vpop.permute.xlu0 %100
    %103 = vset.pattern.permute.xlu0 4
    %104 = vperm.xlu0 %103, %v40
    %v105 = vpop.permute.xlu0 %104
    %107 = vset.pattern.permute.xlu0 4
    %108 = vperm.xlu0 %107, %v41
    %v109 = vpop.permute.xlu0 %108
    %111 = vset.pattern.permute.xlu0 4
    %112 = vperm.xlu0 %111, %v42
    %v113 = vpop.permute.xlu0 %112
    %115 = vset.pattern.permute.xlu0 4
    %116 = vperm.xlu0 %115, %v43
    %v117 = vpop.permute.xlu0 %116
    %119 = vset.pattern.permute.xlu0 4
    %120 = vperm.xlu0 %119, %v44
    %v121 = vpop.permute.xlu0 %120
    %123 = vset.pattern.permute.xlu0 4
    %124 = vperm.xlu0 %123, %v45
    %v125 = vpop.permute.xlu0 %124
    %127 = vset.pattern.permute.xlu0 4
    %128 = vperm.xlu0 %127, %v46
    %v129 = vpop.permute.xlu0 %128
    %v131 = vadd.f32 %v101, %v91
    %v132 = vadd.f32 %v105, %v92
    %v133 = vadd.f32 %v109, %v93
    %v134 = vadd.f32 %v113, %v94
    %v135 = vadd.f32 %v117, %v95
    %v136 = vadd.f32 %v121, %v96
    %v137 = vadd.f32 %v125, %v97
    %v138 = vadd.f32 %v129, %v98
    %139 = vset.pattern.permute.xlu0 1
    %140 = vperm.xlu0 %139, %v39
    %v141 = vpop.permute.xlu0 %140
    %143 = vset.pattern.permute.xlu0 1
    %144 = vperm.xlu0 %143, %v40
    %v145 = vpop.permute.xlu0 %144
    %147 = vset.pattern.permute.xlu0 1
    %148 = vperm.xlu0 %147, %v41
    %v149 = vpop.permute.xlu0 %148
    %151 = vset.pattern.permute.xlu0 1
    %152 = vperm.xlu0 %151, %v42
    %v153 = vpop.permute.xlu0 %152
    %155 = vset.pattern.permute.xlu0 1
    %156 = vperm.xlu0 %155, %v43
    %v157 = vpop.permute.xlu0 %156
    %159 = vset.pattern.permute.xlu0 1
    %160 = vperm.xlu0 %159, %v44
    %v161 = vpop.permute.xlu0 %160
    %163 = vset.pattern.permute.xlu0 1
    %164 = vperm.xlu0 %163, %v45
    %v165 = vpop.permute.xlu0 %164
    %167 = vset.pattern.permute.xlu0 1
    %168 = vperm.xlu0 %167, %v46
    %v169 = vpop.permute.xlu0 %168
    %v171 = vlaneseq
    %v172 = vshrl.u32 %v171, 7
    %v173 = vsub.s32 1, %v172
    %v174 = vrot.slane %v38, %v173
    %v175 = vmul.f32 %v141, %v174
    %v176 = vmul.f32 %v145, %v174
    %v177 = vmul.f32 %v149, %v174
    %v178 = vmul.f32 %v153, %v174
    %v179 = vmul.f32 %v157, %v174
    %v180 = vmul.f32 %v161, %v174
    %v181 = vmul.f32 %v165, %v174
    %v182 = vmul.f32 %v169, %v174
    %v183 = vadd.f32 %v131, %v175
    %v184 = vadd.f32 %v132, %v176
    %v185 = vadd.f32 %v133, %v177
    %v186 = vadd.f32 %v134, %v178
    %v187 = vadd.f32 %v135, %v179
    %v188 = vadd.f32 %v136, %v180
    %v189 = vadd.f32 %v137, %v181
    %v190 = vadd.f32 %v138, %v182
    %191 = vset.pattern.permute.xlu0 2
    %192 = vperm.xlu0 %191, %v39
    %v193 = vpop.permute.xlu0 %192
    %195 = vset.pattern.permute.xlu0 2
    %196 = vperm.xlu0 %195, %v40
    %v197 = vpop.permute.xlu0 %196
    %199 = vset.pattern.permute.xlu0 2
    %200 = vperm.xlu0 %199, %v41
    %v201 = vpop.permute.xlu0 %200
    %203 = vset.pattern.permute.xlu0 2
    %204 = vperm.xlu0 %203, %v42
    %v205 = vpop.permute.xlu0 %204
    %207 = vset.pattern.permute.xlu0 2
    %208 = vperm.xlu0 %207, %v43
    %v209 = vpop.permute.xlu0 %208
    %211 = vset.pattern.permute.xlu0 2
    %212 = vperm.xlu0 %211, %v44
    %v213 = vpop.permute.xlu0 %212
    %215 = vset.pattern.permute.xlu0 2
    %216 = vperm.xlu0 %215, %v45
    %v217 = vpop.permute.xlu0 %216
    %219 = vset.pattern.permute.xlu0 2
    %220 = vperm.xlu0 %219, %v46
    %v221 = vpop.permute.xlu0 %220
    %v223 = vlaneseq
    %v224 = vshrl.u32 %v223, 7
    %v225 = vsub.s32 2, %v224
    %v226 = vrot.slane %v38, %v225
    %v227 = vmul.f32 %v193, %v226
    %v228 = vmul.f32 %v197, %v226
    %v229 = vmul.f32 %v201, %v226
    %v230 = vmul.f32 %v205, %v226
    %v231 = vmul.f32 %v209, %v226
    %v232 = vmul.f32 %v213, %v226
    %v233 = vmul.f32 %v217, %v226
    %v234 = vmul.f32 %v221, %v226
    %v235 = vadd.f32 %v183, %v227
    %v236 = vadd.f32 %v184, %v228
    %v237 = vadd.f32 %v185, %v229
    %v238 = vadd.f32 %v186, %v230
    %v239 = vadd.f32 %v187, %v231
    %v240 = vadd.f32 %v188, %v232
    %v241 = vadd.f32 %v189, %v233
    %v242 = vadd.f32 %v190, %v234
    %243 = vset.pattern.permute.xlu0 3
    %244 = vperm.xlu0 %243, %v39
    %v245 = vpop.permute.xlu0 %244
    %247 = vset.pattern.permute.xlu0 3
    %248 = vperm.xlu0 %247, %v40
    %v249 = vpop.permute.xlu0 %248
    %251 = vset.pattern.permute.xlu0 3
    %252 = vperm.xlu0 %251, %v41
    %v253 = vpop.permute.xlu0 %252
    %255 = vset.pattern.permute.xlu0 3
    %256 = vperm.xlu0 %255, %v42
    %v257 = vpop.permute.xlu0 %256
    %259 = vset.pattern.permute.xlu0 3
    %260 = vperm.xlu0 %259, %v43
    %v261 = vpop.permute.xlu0 %260
    %263 = vset.pattern.permute.xlu0 3
    %264 = vperm.xlu0 %263, %v44
    %v265 = vpop.permute.xlu0 %264
    %267 = vset.pattern.permute.xlu0 3
    %268 = vperm.xlu0 %267, %v45
    %v269 = vpop.permute.xlu0 %268
    %271 = vset.pattern.permute.xlu0 3
    %272 = vperm.xlu0 %271, %v46
    %v273 = vpop.permute.xlu0 %272
    %v275 = vlaneseq
    %v276 = vshrl.u32 %v275, 7
    %v277 = vsub.s32 3, %v276
    %v278 = vrot.slane %v38, %v277
    %v279 = vmul.f32 %v245, %v278
    %v280 = vmul.f32 %v249, %v278
    %v281 = vmul.f32 %v253, %v278
    %v282 = vmul.f32 %v257, %v278
    %v283 = vmul.f32 %v261, %v278
    %v284 = vmul.f32 %v265, %v278
    %v285 = vmul.f32 %v269, %v278
    %v286 = vmul.f32 %v273, %v278
    %v287 = vadd.f32 %v235, %v279
    %v288 = vadd.f32 %v236, %v280
    %v289 = vadd.f32 %v237, %v281
    %v290 = vadd.f32 %v238, %v282
    %v291 = vadd.f32 %v239, %v283
    %v292 = vadd.f32 %v240, %v284
    %v293 = vadd.f32 %v241, %v285
    %v294 = vadd.f32 %v242, %v286
    %v295 = vmax.f32 %v287, 0.0
    %v296 = vmax.f32 %v288, 0.0
    %v297 = vmax.f32 %v289, 0.0
    %v298 = vmax.f32 %v290, 0.0
    %v299 = vmax.f32 %v291, 0.0
    %v300 = vmax.f32 %v292, 0.0
    %v301 = vmax.f32 %v293, 0.0
    %v302 = vmax.f32 %v294, 0.0
    %v303 = vld [vmem:[#allocation5 + $0x40] sm:$0xff]
    %v304 = vld [vmem:[#allocation5 + $0x48] sm:$0xff]
    %v305 = vld [vmem:[#allocation5 + $0x50] sm:$0xff]
    %v306 = vld [vmem:[#allocation5 + $0x58] sm:$0xff]
    %v307 = vld [vmem:[#allocation5 + $0x60] sm:$0xff]
    %v308 = vld [vmem:[#allocation5 + $0x68] sm:$0xff]
    %v309 = vld [vmem:[#allocation5 + $0x70] sm:$0xff]
    %v310 = vld [vmem:[#allocation5 + $0x78] sm:$0xff]
    %312 = vset.pattern.permute.xlu0 0
    %313 = vperm.xlu0 %312, %v307
    %v314 = vpop.permute.xlu0 %313
    %317 = vset.pattern.permute.xlu0 0
    %318 = vperm.xlu0 %317, %v308
    %v319 = vpop.permute.xlu0 %318
    %322 = vset.pattern.permute.xlu0 0
    %323 = vperm.xlu0 %322, %v309
    %v324 = vpop.permute.xlu0 %323
    %327 = vset.pattern.permute.xlu0 0
    %328 = vperm.xlu0 %327, %v310
    %v329 = vpop.permute.xlu0 %328
    %vm331 = vcmask 523264
    %v333 = vsel %vm331, %v303, 0
    %v336 = vsel %vm331, %v304, 0
    %v339 = vsel %vm331, %v305, 0
    %v342 = vsel %vm331, %v306, 0
    %344 = vmatprep.subr.mxu0 0.0
    %345 = vmatpush1.msra.mxu0 %v295
    %346 = vmatprep.subr.mxu0 0.0
    %347 = vmatpush1.msra.mxu0 %v296
    %348 = vmatprep.subr.mxu0 0.0
    %349 = vmatpush1.msra.mxu0 %v297
    %350 = vmatprep.subr.mxu0 0.0
    %351 = vmatpush1.msra.mxu0 %v298
    %352 = vmatprep.subr.mxu0 0.0
    %353 = vmatpush1.msra.mxu0 %v299
    %354 = vmatprep.subr.mxu0 0.0
    %355 = vmatpush1.msra.mxu0 %v300
    %356 = vmatprep.subr.mxu0 0.0
    %357 = vmatpush1.msra.mxu0 %v301
    %358 = vmatprep.subr.mxu0 0.0
    %359 = vmatpush1.msra.mxu0 %v302
    %360 = vmatprep.subr.mxu0 0.0
    %361 = vmatpush1.msra.mxu0 0.0
    %362 = vmatprep.subr.mxu0 0.0
    %363 = vmatpush1.msra.mxu0 0.0
    %364 = vmatprep.subr.mxu0 0.0
    %365 = vmatpush1.msra.mxu0 0.0
    %366 = vmatprep.subr.mxu0 0.0
    %367 = vmatpush1.msra.mxu0 0.0
    %368 = vmatprep.subr.mxu0 0.0
    %369 = vmatpush1.msra.mxu0 0.0
    %370 = vmatprep.subr.mxu0 0.0
    %371 = vmatpush1.msra.mxu0 0.0
    %372 = vmatprep.subr.mxu0 0.0
    %373 = vmatpush1.msra.mxu0 0.0
    %374 = vmatprep.subr.mxu0 0.0
    %375 = vmatpush1.msra.mxu0 0.0
    %376 = vmatprep.subr.mxu0 0.0
    %377 = vmatpush1.msra.mxu0 0.0
    %378 = vmatprep.subr.mxu0 0.0
    %379 = vmatpush1.msra.mxu0 0.0
    %380 = vmatprep.subr.mxu0 0.0
    %381 = vmatpush1.msra.mxu0 0.0
    %382 = vmatprep.subr.mxu0 0.0
    %383 = vmatpush1.msra.mxu0 0.0
    %384 = vmatprep.subr.mxu0 0.0
    %385 = vmatpush1.msra.mxu0 0.0
    %386 = vmatprep.subr.mxu0 0.0
    %387 = vmatpush1.msra.mxu0 0.0
    %388 = vmatprep.subr.mxu0 0.0
    %389 = vmatpush1.msra.mxu0 0.0
    %390 = vmatprep.subr.mxu0 0.0
    %391 = vmatpush1.msra.mxu0 0.0
    %392 = vmatprep.subr.mxu0 0.0
    %393 = vmatpush1.msra.mxu0 0.0
    %394 = vmatprep.subr.mxu0 0.0
    %395 = vmatpush1.msra.mxu0 0.0
    %396 = vmatprep.subr.mxu0 0.0
    %397 = vmatpush1.msra.mxu0 0.0
    %398 = vmatprep.subr.mxu0 0.0
    %399 = vmatpush1.msra.mxu0 0.0
    %400 = vmatprep.subr.mxu0 0.0
    %401 = vmatpush1.msra.mxu0 0.0
    %402 = vmatprep.subr.mxu0 0.0
    %403 = vmatpush1.msra.mxu0 0.0
    %404 = vmatprep.subr.mxu0 0.0
    %405 = vmatpush1.msra.mxu0 0.0
    %406 = vmatprep.subr.mxu0 0.0
    %407 = vmatpush1.msra.mxu0 0.0
    %408 = vmatprep.mubr.f32.mxu0 0.0
    %409 = vmatmul.mubr.f32.gmra.mrb[0].mxu0 %v333
    %v410 = vpop.f32.mrb[0].mxu0
    %v411 = vadd.f32 %v314, %v410
    %v412 = vpop.f32.mrb[0].mxu0
    %413 = vmatprep.mubr.f32.mxu0 0.0
    %414 = vmatmul.mubr.f32.gmra.mrb[0].mxu0 %v336
    %v415 = vpop.f32.mrb[0].mxu0
    %v416 = vadd.f32 %v319, %v415
    %v417 = vpop.f32.mrb[0].mxu0
    %418 = vmatprep.mubr.f32.mxu0 0.0
    %419 = vmatmul.mubr.f32.gmra.mrb[0].mxu0 %v339
    %v420 = vpop.f32.mrb[0].mxu0
    %v421 = vadd.f32 %v324, %v420
    %v422 = vpop.f32.mrb[0].mxu0
    %423 = vmatprep.mubr.f32.mxu0 0.0
    %424 = vmatmul.mubr.f32.gmra.mrb[0].mxu0 %v342
    %v425 = vpop.f32.mrb[0].mxu0
    %v426 = vadd.f32 %v329, %v425
    %v427 = vpop.f32.mrb[0].mxu0
    %428 = vdwg.mxu0
    %v429 = vmax.f32 %v411, 0.0
    %v430 = vmax.f32 %v416, 0.0
    %v431 = vmax.f32 %v421, 0.0
    %v432 = vmax.f32 %v426, 0.0
    %v433 = vld [vmem:[#allocation5 + $0x80] sm:$0xff]
    %v434 = vld [vmem:[#allocation5 + $0x88] sm:$0xff]
    %v435 = vld [vmem:[#allocation5 + $0x90] sm:$0xff]
    %v436 = vld [vmem:[#allocation5 + $0x98] sm:$0xff]
    %v437 = vld [vmem:[#allocation5 + $0xa0] sm:$0x1]
    %439 = vset.pattern.permute.xlu0 0
    %440 = vperm.xlu0 %439, %v433
    %v441 = vpop.permute.xlu0 %440
    %444 = vset.pattern.permute.xlu0 0
    %445 = vperm.xlu0 %444, %v434
    %v446 = vpop.permute.xlu0 %445
    %449 = vset.pattern.permute.xlu0 0
    %450 = vperm.xlu0 %449, %v435
    %v451 = vpop.permute.xlu0 %450
    %454 = vset.pattern.permute.xlu0 0
    %455 = vperm.xlu0 %454, %v436
    %v456 = vpop.permute.xlu0 %455
    %v458 = vmul.f32 %v429, %v441
    %v459 = vmul.f32 %v430, %v446
    %v460 = vmul.f32 %v431, %v451
    %v461 = vmul.f32 %v432, %v456
    %v462 = vadd.f32 %v458, %v459
    %v463 = vadd.f32 %v462, %v460
    %v464 = vadd.f32 %v463, %v461
    %v465 = vrot.slane %v464, 4
    %v466 = vadd.f32 %v464, %v465
    %v467 = vrot.slane %v466, 2
    %v468 = vadd.f32 %v466, %v467
    %v469 = vrot.slane %v468, 1
    %v470 = vadd.f32 %v468, %v469
    %472 = vset.pattern.permute.xlu0 0
    %473 = vperm.xlu0 %472, %v437
    %v474 = vpop.permute.xlu0 %473
    %v476 = vadd.f32 %v470, %v474
    %477 = vst [vmem:[#allocation7] sm:$0x1] %v476
    // Predicated region
    $region18: #{tpu_custom_call.1} parent=1 // pred_check
      _
    $region19: #{tpu_custom_call.1} parent=1 // pred_check_branch
      %479 = sbr.rel (0) target = $region21
    $region20: #{tpu_custom_call.1} parent=1 // pred_region
      %s481 = ssub.s32 16, 16
      %482 = vsyncadd [#allocation4], %s481
      %s484 = sshll.u32 [#allocation7], 4
      %s485 = int_to_ptr.vmem [resolvable:$true] %s484
      %487 = dma.vmem_to_hbm [thread:$0]  %s485, 16, %s2, [#allocation4]
    $region21: #{tpu_custom_call.1} parent=1 // pred_fallthru
      _
    // Predicated region
    $region22: #{tpu_custom_call.1} parent=1 // pred_check
      _
    $region23: #{tpu_custom_call.1} parent=1 // pred_check_branch
      %489 = sbr.rel (0) target = $region25
    $region24: #{tpu_custom_call.1} parent=1 // pred_region
      %490 = dma.done [#allocation4], 16
    $region25: #{tpu_custom_call.1} parent=1 // pred_fallthru
      _
    %491 = vsyncpa [#allocation3], 1
    %492 = vsyncpa [#allocation6], 1
    %493 = vsyncpa [#allocation4], 1

</llo_original>
